<compile_context>
chip_gen: v5e
topology: v5e:2x2
jax: 0.10.0
libtpu: 0.0.40
codegen_flags: <defaults>
</compile_context>

<pallas_src>
import functools
import math

import jax
import jax.numpy as jnp
from jax import lax
from jax.experimental import pallas as pl
from jax.experimental.pallas import tpu as pltpu

BN_EPS = 1e-5        # nn.BatchNorm1d default eps
L2_EPS = 1e-12       # F.normalize default eps
F32 = jnp.float32
BF16 = jnp.bfloat16


# ----------------------------- fused Pallas kernel -------------------------

def _bn_prelu(h, gamma, beta, slope):
    # BatchNorm1d (training mode, biased batch stats) + PReLU.
    # One-pass stats: var = E[h^2] - E[h]^2  (half the XLU reductions).
    mean = jnp.mean(h, axis=0, keepdims=True)
    msq = jnp.mean(h * h, axis=0, keepdims=True)
    var = jnp.maximum(msq - mean * mean, 0.0)
    hn = (h - mean) * lax.rsqrt(var + BN_EPS)
    hn = hn * gamma + beta
    return jnp.where(hn >= 0.0, hn, slope * hn)


def _row_normalize(x):
    # F.normalize(x, p=2, dim=-1): x * rsqrt(max(||x||^2, eps^2))
    s = jnp.sum(x * x, axis=-1, keepdims=True)
    return x * lax.rsqrt(jnp.maximum(s, L2_EPS * L2_EPS))


def make_fused_kernel(layer_widths, pred_hid, rep, alpha):
    """Fused forward kernel.

    Ref layout:
      a_hat(bf16), x,
      w_fused[0..L-1]                  (student|teacher fused GCN weights)
      pw1, pw2                         (predictor weights)
      vec_slab                         (all bias/gamma/beta/slope rows)
      mu
      -> sim (N,N), slab (N, 3*rep + K) = [student | pred_n | teacher_n | q]
    """
    n_layers = len(layer_widths)

    def kernel(*refs):
        a_ref, x_ref = refs[0], refs[1]
        w_refs = refs[2:2 + n_layers]
        pw1_ref, pw2_ref, vec_ref, mu_ref = refs[2 + n_layers:6 + n_layers]
        sim_out, slab_out = refs[6 + n_layers:]

        a = a_ref[...]                        # bf16 (N, N)
        h = x_ref[...]                        # f32  (N, F0)

        # Fused student|teacher GCN layers: A_hat @ (H @ W_fused) + b -> BN -> PReLU.
        row = 0
        for li in range(n_layers):
            w2 = layer_widths[li]             # fused width = 2 * F_out
            xw = jnp.dot(h, w_refs[li][...], preferred_element_type=jnp.float32)
            # dominant matmul: bf16 MXU inputs, f32 accumulation, 2F output cols
            h = jnp.dot(a, xw.astype(BF16), preferred_element_type=jnp.float32)
            b = vec_ref[row + 0:row + 1, :w2]
            g = vec_ref[row + 1:row + 2, :w2]
            be = vec_ref[row + 2:row + 3, :w2]
            sl = vec_ref[row + 3:row + 4, :w2]
            row += 4
            h = _bn_prelu(h + b, g, be, sl)

        student = h[:, :rep]
        teacher = h[:, rep:]

        # student_predictor: Linear -> BatchNorm1d -> PReLU -> Linear.
        b1 = vec_ref[row + 0:row + 1, :pred_hid]
        g1 = vec_ref[row + 1:row + 2, :pred_hid]
        be1 = vec_ref[row + 2:row + 3, :pred_hid]
        sl1 = vec_ref[row + 3:row + 4, :pred_hid]
        b2 = vec_ref[row + 4:row + 5, :rep]
        p = jnp.dot(student, pw1_ref[...], preferred_element_type=jnp.float32) + b1
        p = _bn_prelu(p, g1, be1, sl1)
        pred = jnp.dot(p, pw2_ref[...], preferred_element_type=jnp.float32) + b2

        sn = _row_normalize(student)
        tn = _row_normalize(teacher)
        pn = _row_normalize(pred)

        # Neighbor: similarity = normalize(student) @ normalize(teacher).T
        # (+10*I handled outside as an N-element diagonal scatter).
        sim_out[...] = lax.dot_general(
            sn.astype(BF16), tn.astype(BF16), (((1,), (1,)), ((), ())),
            preferred_element_type=jnp.float32)

        # Student-t soft assignment on raw student: ||x - mu||^2 via the MXU.
        mu = mu_ref[...]
        x2 = jnp.sum(student * student, axis=-1, keepdims=True)       # (N, 1)
        mu2 = jnp.sum(mu * mu, axis=-1)[None, :]                      # (1, K)
        xm = lax.dot_general(student, mu, (((1,), (1,)), ((), ())),
                             preferred_element_type=jnp.float32)      # (N, K)
        d2 = jnp.maximum(x2 + mu2 - 2.0 * xm, 0.0)
        q = pl.reciprocal(1.0 + d2 * (1.0 / alpha) + 1e-8, approx=True)
        # source precedence: (q ** (alpha + 1)) / 2 -> the /2 cancels below.
        q = jnp.exp((alpha + 1.0) * jnp.log(q))
        q = q * pl.reciprocal(jnp.sum(q, axis=1, keepdims=True), approx=True)

        # Lane-dense output slab: [student | pred_n | teacher_n | q].
        slab_out[:, 0:rep] = student
        slab_out[:, rep:2 * rep] = pn
        slab_out[:, 2 * rep:3 * rep] = tn
        slab_out[:, 3 * rep:] = q

    return kernel


def _pack_params(params):
    """Pack all per-layer parameters into a few slabs (cuts input DMA count)."""
    enc, tea, prd = params["encoder"], params["teacher"], params["predictor"]
    n_layers = len(enc)
    w_fused, vec_rows = [], []
    for li in range(n_layers):
        s, t = enc[li], tea[li]
        fi, fo = s["w"].shape
        if li == 0:
            # layer 1: shared input x -> concat along output features
            wf = jnp.concatenate([s["w"], t["w"]], axis=1)
        else:
            # deeper layers: input is [h_s | h_t] -> block-diagonal weight
            z = jnp.zeros((fi, fo), F32)
            wf = jnp.concatenate(
                [jnp.concatenate([s["w"], z], axis=1),
                 jnp.concatenate([z, t["w"]], axis=1)], axis=0)
        w_fused.append(wf)
        vec_rows += [
            jnp.concatenate([s["b"].reshape(-1), t["b"].reshape(-1)]),
            jnp.concatenate([s["gamma"].reshape(-1), t["gamma"].reshape(-1)]),
            jnp.concatenate([s["beta"].reshape(-1), t["beta"].reshape(-1)]),
            jnp.concatenate([jnp.broadcast_to(s["prelu"], (fo,)),
                             jnp.broadcast_to(t["prelu"], (fo,))]),
        ]
    ph = prd["w1"].shape[1]
    vec_rows += [prd["b1"].reshape(-1), prd["gamma"].reshape(-1),
                 prd["beta"].reshape(-1), jnp.broadcast_to(prd["prelu"], (ph,)),
                 prd["b2"].reshape(-1)]
    maxw = max(int(v.shape[0]) for v in vec_rows)
    vec_slab = jnp.stack(
        [jnp.pad(v.astype(F32), (0, maxw - int(v.shape[0]))) for v in vec_rows])
    return w_fused, vec_slab


def fused_forward(a_hat, x, params, *, alpha):
    n = x.shape[0]
    prd = params["predictor"]
    rep = prd["w2"].shape[1]
    pred_hid = prd["w1"].shape[1]
    k = params["mu"].shape[0]

    w_fused, vec_slab = _pack_params(params)
    layer_widths = [int(w.shape[1]) for w in w_fused]

    inputs = ([a_hat.astype(BF16), x.astype(F32)] + w_fused +
              [prd["w1"], prd["w2"], vec_slab, params["mu"]])

    slab_w = 3 * rep + k
    out_shape = (jax.ShapeDtypeStruct((n, n), F32),          # similarity
                 jax.ShapeDtypeStruct((n, slab_w), F32))     # [student|pn|tn|q]

    in_bytes = sum(int(v.size) * v.dtype.itemsize for v in inputs)
    out_bytes = (n * n + n * slab_w) * 4
    # explicit scoped-VMEM limit derived from the resident set (safe on v5e/v6e/v7x)
    vmem_limit = int(min(max(4 * (in_bytes + out_bytes), 32 << 20), 64 << 20))

    sim, slab = pl.pallas_call(
        make_fused_kernel(layer_widths, pred_hid, rep, alpha),
        out_shape=out_shape,
        in_specs=[pl.BlockSpec(memory_space=pltpu.MemorySpace.VMEM)
                  for _ in inputs],
        out_specs=tuple(pl.BlockSpec(memory_space=pltpu.MemorySpace.VMEM)
                        for _ in out_shape),
        compiler_params=pltpu.CompilerParams(vmem_limit_bytes=vmem_limit),
    )(*inputs)

    student = slab[:, :rep]
    pn = slab[:, rep:2 * rep]
    tn = slab[:, 2 * rep:3 * rep]
    q = slab[:, 3 * rep:]
    # Neighbor: similarity += 10 * I -> N-element diagonal scatter (not O(N^2)).
    diag = jnp.arange(n)
    sim = sim.at[diag, diag].add(10.0)
    return student, pn, tn, q, sim


# ---------------------- fused masked-loss reduction kernel ------------------

def _loss_reduce_kernel(mask_ref, tp_ref, out_ref):
    # out = sum(pn * (M @ tn)) + sum(tn * (M @ pn))   with tp = [tn | pn]
    rep = tp_ref.shape[1] // 2
    m = mask_ref[...]
    tp = tp_ref[...]
    prod = jnp.dot(m, tp, preferred_element_type=jnp.float32)     # (N, 2*rep)
    contrib = tp[:, rep:] * prod[:, :rep] + tp[:, :rep] * prod[:, rep:]
    out_ref[...] = jnp.sum(jnp.sum(contrib, axis=1, keepdims=True),
                           axis=0, keepdims=True)


def masked_pair_loss(pos_mask, pn, tn):
    # mean over pos entries (i,j) of loss_fn(pred_i, teacher_j) + loss_fn(pred_j, teacher_i)
    #   = sum((M + M.T) * (2 - 2 * pn@tn.T)) / count
    #   = 4 - 2 * [sum(pn * (M@tn)) + sum(tn * (M@pn))] / count
    # -> the (N, N) loss matrix is never materialized (and no (N, N) transpose).
    # TODO(synk): loss_fn is undefined in the source; standard AFGRL/BYOL cosine
    # loss (2 - 2*cos) is assumed.
    tp = jnp.concatenate([tn, pn], axis=1)
    s = pl.pallas_call(
        _loss_reduce_kernel,
        out_shape=jax.ShapeDtypeStruct((1, 1), F32),
        in_specs=[pl.BlockSpec(memory_space=pltpu.MemorySpace.VMEM),
                  pl.BlockSpec(memory_space=pltpu.MemorySpace.VMEM)],
        out_specs=pl.BlockSpec(memory_space=pltpu.MemorySpace.VMEM),
    )(pos_mask.astype(F32), tp)[0, 0]
    count = jnp.sum(pos_mask).astype(F32)
    return 4.0 - 2.0 * s / count


# ------------------------------- JAX glue -----------------------------------

def build_norm_adj(edge_index, n):
    # GCN normalization: A_hat = D^-1/2 (A + I) D^-1/2 (edge_weight=None -> ones).
    a = jnp.zeros((n, n), F32).at[edge_index[0], edge_index[1]].add(1.0)
    a = a + jnp.eye(n, dtype=F32)
    deg = jnp.sum(a, axis=1)
    dinv = jnp.where(deg > 0, 1.0 / jnp.sqrt(deg), 0.0)
    return dinv[:, None] * a * dinv[None, :]


def _pairwise_sq_dist(x, c):
    x2 = jnp.sum(x * x, axis=1, keepdims=True)
    c2 = jnp.sum(c * c, axis=1)[None, :]
    return jnp.maximum(x2 + c2 - 2.0 * (x @ c.T), 0.0)


def simple_kmeans(x, k, niter, seed):
    # TODO(synk): faiss.Kmeans has no Pallas/JAX equivalent; replaced by plain
    # seeded Lloyd's k-means producing cluster labels.
    key = jax.random.PRNGKey(seed)
    idx = jax.random.choice(key, x.shape[0], (k,), replace=False)
    cent = x[idx]
    for _ in range(niter):
        lab = jnp.argmin(_pairwise_sq_dist(x, cent), axis=1)
        onehot = jax.nn.one_hot(lab, k, dtype=F32)
        counts = jnp.sum(onehot, axis=0)
        sums = onehot.T @ x
        cent = jnp.where(counts[:, None] > 0,
                         sums / jnp.maximum(counts[:, None], 1.0), cent)
    return jnp.argmin(_pairwise_sq_dist(x, cent), axis=1)


def simple_afsc_forward(params, x, edge_index, neighbor_index, *,
                        alpha, topk, num_centroids, num_kmeans, clus_num_iters):
    n = x.shape[0]
    a_hat = build_norm_adj(edge_index, n)

    # One fused Pallas kernel produces sim, student, normalized pred/teacher, q.
    student, pn, tn, q, sim = fused_forward(a_hat, x, params, alpha=alpha)

    # adj = sparse(neighbor_index, ones) as dense (edge_weight is None path).
    adj = jnp.zeros((n, n), F32).at[neighbor_index[0], neighbor_index[1]].add(1.0)

    # --- Neighbor.forward (top-k / k-means glue) ---
    _, i_knn = lax.top_k(sim, topk)
    rows = jnp.repeat(jnp.arange(n), topk)
    cols = i_knn.reshape(-1)
    knn_mask = jnp.zeros((n, n), F32).at[rows, cols].add(1.0)
    locality = knn_mask * adj

    close = jnp.zeros((n, topk), dtype=bool)
    for seed in range(num_kmeans):
        # the original trains k-means on the normalized teacher embedding
        lab = simple_kmeans(tn, num_centroids, clus_num_iters, seed + 1234)
        close = close | (lab[:, None] == lab[i_knn])
    globality = jnp.zeros((n, n), F32).at[rows, cols].add(
        close.reshape(-1).astype(F32))

    # pos_ = (locality + globality).coalesce(); loss = mean over nonzero (i,j) of
    # loss_fn(pred_i, teacher_j) + loss_fn(pred_j, teacher_i).
    pos_mask = (locality + globality) > 0.0
    loss = masked_pair_loss(pos_mask, pn, tn)

    return student, q, loss


# --------------------------- parameter init ---------------------------------

def init_params(key, layer_config, pred_hid, n_clusters):
    keys = jax.random.split(key, 8)

    def linear(k, fan_in, fan_out):
        bound = 1.0 / math.sqrt(fan_in)
        return jax.random.uniform(k, (fan_in, fan_out), F32, -bound, bound)

    enc = []
    kenc = jax.random.split(keys[0], len(layer_config) - 1)
    for i in range(1, len(layer_config)):
        fi, fo = layer_config[i - 1], layer_config[i]
        enc.append(dict(
            w=linear(kenc[i - 1], fi, fo),
            b=jnp.zeros((1, fo), F32),
            gamma=jnp.ones((1, fo), F32),
            beta=jnp.zeros((1, fo), F32),
            prelu=jnp.full((1,), 0.25, F32),
        ))
    rep = layer_config[-1]
    predictor = dict(
        w1=linear(keys[1], rep, pred_hid), b1=jnp.zeros((1, pred_hid), F32),
        gamma=jnp.ones((1, pred_hid), F32), beta=jnp.zeros((1, pred_hid), F32),
        prelu=jnp.full((1,), 0.25, F32),
        w2=linear(keys[2], pred_hid, rep), b2=jnp.zeros((1, rep), F32),
    )
    mu = jax.random.normal(keys[3], (n_clusters, rep), F32)
    # teacher_encoder = copy.deepcopy(student_encoder)  -> identical parameters.
    teacher = [dict(p) for p in enc]
    return dict(encoder=enc, teacher=teacher, predictor=predictor, mu=mu)


# ---------------------------------- main -------------------------------------

if __name__ == "__main__":
    N, IN_DIM = 16, 8
    layer_config = [IN_DIM, 32, 16]      # Encoder: GCN 8->32->16
    pred_hid = 32                        # args.pred_hid
    n_clusters, nhid = 3, layer_config[-1]
    alpha = 0.2
    topk = 4                             # args.topk
    num_centroids, num_kmeans, clus_num_iters = 3, 2, 5

    key = jax.random.PRNGKey(0)
    kx, ks, kd, kp = jax.random.split(key, 4)
    x = jax.random.normal(kx, (N, IN_DIM), F32)

    src = jax.random.randint(ks, (24,), 0, N)
    dst = jax.random.randint(kd, (24,), 0, N)
    edge_index = jnp.stack([jnp.concatenate([src, dst]),
                            jnp.concatenate([dst, src])])      # (2, 48), undirected
    neighbor_index = edge_index                                # precomputed neighbor graph

    params = init_params(kp, layer_config, pred_hid, n_clusters)

    fwd = jax.jit(functools.partial(
        simple_afsc_forward, alpha=alpha, topk=topk,
        num_centroids=num_centroids, num_kmeans=num_kmeans,
        clus_num_iters=clus_num_iters))

    student, q, loss = fwd(params, x, edge_index, neighbor_index)

    jax.block_until_ready((student, q, loss))
    assert student.shape == (N, nhid)
    assert q.shape == (N, n_clusters)
    assert jnp.isfinite(loss)
    print("KERNEL_OK")
</pallas_src>

<mosaic_0001>
module attributes {stable_mosaic.version = 11 : i64} {
  func.func @kernel(%arg0: memref<16x16xbf16, #tpu.memory_space<vmem>>, %arg1: memref<16x8xf32, #tpu.memory_space<vmem>>, %arg2: memref<8x64xf32, #tpu.memory_space<vmem>>, %arg3: memref<64x32xf32, #tpu.memory_space<vmem>>, %arg4: memref<16x32xf32, #tpu.memory_space<vmem>>, %arg5: memref<32x16xf32, #tpu.memory_space<vmem>>, %arg6: memref<13x64xf32, #tpu.memory_space<vmem>>, %arg7: memref<3x16xf32, #tpu.memory_space<vmem>>, %arg8: memref<16x16xf32, #tpu.memory_space<vmem>>, %arg9: memref<16x51xf32, #tpu.memory_space<vmem>>) attributes {dimension_semantics = [], scalar_prefetch = 0 : i64, scratch_operands = 0 : i64, tpu.core_type = #tpu.core_type<tc>} {
    %c0 = arith.constant 0 : index
    %c0_0 = arith.constant 0 : index
    %0 = vector.load %arg0[%c0, %c0_0] : memref<16x16xbf16, #tpu.memory_space<vmem>>, vector<16x16xbf16>
    %c0_1 = arith.constant 0 : index
    %c0_2 = arith.constant 0 : index
    %1 = vector.load %arg1[%c0_1, %c0_2] : memref<16x8xf32, #tpu.memory_space<vmem>>, vector<16x8xf32>
    %c0_3 = arith.constant 0 : index
    %c0_4 = arith.constant 0 : index
    %2 = vector.load %arg2[%c0_3, %c0_4] : memref<8x64xf32, #tpu.memory_space<vmem>>, vector<8x64xf32>
    %cst = arith.constant dense<0.000000e+00> : vector<16x64xf32>
    %3 = tpu.matmul %1, %2, %cst {dimension_numbers = #tpu.dot_dimension_numbers<[1], [0], [0], [1], [0, 0, 1, 1], [], []>} : vector<16x8xf32>, vector<8x64xf32>, vector<16x64xf32> -> vector<16x64xf32>
    %4 = arith.truncf %3 : vector<16x64xf32> to vector<16x64xbf16>
    %cst_5 = arith.constant dense<0.000000e+00> : vector<16x64xf32>
    %5 = tpu.matmul %0, %4, %cst_5 {dimension_numbers = #tpu.dot_dimension_numbers<[1], [0], [0], [1], [0, 0, 1, 1], [], []>} : vector<16x16xbf16>, vector<16x64xbf16>, vector<16x64xf32> -> vector<16x64xf32>
    %c0_6 = arith.constant 0 : index
    %c0_7 = arith.constant 0 : index
    %6 = vector.load %arg6[%c0_6, %c0_7] : memref<13x64xf32, #tpu.memory_space<vmem>>, vector<1x64xf32>
    %c1 = arith.constant 1 : index
    %c0_8 = arith.constant 0 : index
    %7 = vector.load %arg6[%c1, %c0_8] : memref<13x64xf32, #tpu.memory_space<vmem>>, vector<1x64xf32>
    %c2 = arith.constant 2 : index
    %c0_9 = arith.constant 0 : index
    %8 = vector.load %arg6[%c2, %c0_9] : memref<13x64xf32, #tpu.memory_space<vmem>>, vector<1x64xf32>
    %c3 = arith.constant 3 : index
    %c0_10 = arith.constant 0 : index
    %9 = vector.load %arg6[%c3, %c0_10] : memref<13x64xf32, #tpu.memory_space<vmem>>, vector<1x64xf32>
    %10 = vector.broadcast %6 : vector<1x64xf32> to vector<16x64xf32>
    %11 = arith.addf %5, %10 : vector<16x64xf32>
    %cst_11 = arith.constant dense<0.000000e+00> : vector<64xf32>
    %12 = vector.multi_reduction <add>, %11, %cst_11 [0] : vector<16x64xf32> to vector<64xf32>
    %13 = vector.shape_cast %12 : vector<64xf32> to vector<1x64xf32>
    %cst_12 = arith.constant 1.600000e+01 : f32
    %14 = vector.broadcast %cst_12 : f32 to vector<1x64xf32>
    %15 = arith.divf %13, %14 : vector<1x64xf32>
    %16 = arith.mulf %11, %11 : vector<16x64xf32>
    %cst_13 = arith.constant dense<0.000000e+00> : vector<64xf32>
    %17 = vector.multi_reduction <add>, %16, %cst_13 [0] : vector<16x64xf32> to vector<64xf32>
    %18 = vector.shape_cast %17 : vector<64xf32> to vector<1x64xf32>
    %cst_14 = arith.constant 1.600000e+01 : f32
    %19 = vector.broadcast %cst_14 : f32 to vector<1x64xf32>
    %20 = arith.divf %18, %19 : vector<1x64xf32>
    %21 = arith.mulf %15, %15 : vector<1x64xf32>
    %22 = arith.subf %20, %21 : vector<1x64xf32>
    %cst_15 = arith.constant 0.000000e+00 : f32
    %23 = vector.broadcast %cst_15 : f32 to vector<1x64xf32>
    %24 = arith.maximumf %22, %23 : vector<1x64xf32>
    %25 = vector.broadcast %15 : vector<1x64xf32> to vector<16x64xf32>
    %26 = arith.subf %11, %25 : vector<16x64xf32>
    %cst_16 = arith.constant 9.99999974E-6 : f32
    %27 = vector.broadcast %cst_16 : f32 to vector<1x64xf32>
    %28 = arith.addf %24, %27 : vector<1x64xf32>
    %29 = math.rsqrt %28 : vector<1x64xf32>
    %30 = vector.broadcast %29 : vector<1x64xf32> to vector<16x64xf32>
    %31 = arith.mulf %26, %30 : vector<16x64xf32>
    %32 = vector.broadcast %7 : vector<1x64xf32> to vector<16x64xf32>
    %33 = arith.mulf %31, %32 : vector<16x64xf32>
    %34 = vector.broadcast %8 : vector<1x64xf32> to vector<16x64xf32>
    %35 = arith.addf %33, %34 : vector<16x64xf32>
    %cst_17 = arith.constant 0.000000e+00 : f32
    %36 = vector.broadcast %cst_17 : f32 to vector<16x64xf32>
    %37 = arith.cmpf oge, %35, %36 : vector<16x64xf32>
    %38 = vector.broadcast %9 : vector<1x64xf32> to vector<16x64xf32>
    %39 = arith.mulf %38, %35 : vector<16x64xf32>
    %40 = arith.select %37, %35, %39 : vector<16x64xi1>, vector<16x64xf32>
    %c0_18 = arith.constant 0 : index
    %c0_19 = arith.constant 0 : index
    %41 = vector.load %arg3[%c0_18, %c0_19] : memref<64x32xf32, #tpu.memory_space<vmem>>, vector<64x32xf32>
    %cst_20 = arith.constant dense<0.000000e+00> : vector<16x32xf32>
    %42 = tpu.matmul %40, %41, %cst_20 {dimension_numbers = #tpu.dot_dimension_numbers<[1], [0], [0], [1], [0, 0, 1, 1], [], []>} : vector<16x64xf32>, vector<64x32xf32>, vector<16x32xf32> -> vector<16x32xf32>
    %43 = arith.truncf %42 : vector<16x32xf32> to vector<16x32xbf16>
    %cst_21 = arith.constant dense<0.000000e+00> : vector<16x32xf32>
    %44 = tpu.matmul %0, %43, %cst_21 {dimension_numbers = #tpu.dot_dimension_numbers<[1], [0], [0], [1], [0, 0, 1, 1], [], []>} : vector<16x16xbf16>, vector<16x32xbf16>, vector<16x32xf32> -> vector<16x32xf32>
    %c4 = arith.constant 4 : index
    %c0_22 = arith.constant 0 : index
    %45 = vector.load %arg6[%c4, %c0_22] : memref<13x64xf32, #tpu.memory_space<vmem>>, vector<1x32xf32>
    %c5 = arith.constant 5 : index
    %c0_23 = arith.constant 0 : index
    %46 = vector.load %arg6[%c5, %c0_23] : memref<13x64xf32, #tpu.memory_space<vmem>>, vector<1x32xf32>
    %c6 = arith.constant 6 : index
    %c0_24 = arith.constant 0 : index
    %47 = vector.load %arg6[%c6, %c0_24] : memref<13x64xf32, #tpu.memory_space<vmem>>, vector<1x32xf32>
    %c7 = arith.constant 7 : index
    %c0_25 = arith.constant 0 : index
    %48 = vector.load %arg6[%c7, %c0_25] : memref<13x64xf32, #tpu.memory_space<vmem>>, vector<1x32xf32>
    %49 = vector.broadcast %45 : vector<1x32xf32> to vector<16x32xf32>
    %50 = arith.addf %44, %49 : vector<16x32xf32>
    %cst_26 = arith.constant dense<0.000000e+00> : vector<32xf32>
    %51 = vector.multi_reduction <add>, %50, %cst_26 [0] : vector<16x32xf32> to vector<32xf32>
    %52 = vector.shape_cast %51 : vector<32xf32> to vector<1x32xf32>
    %cst_27 = arith.constant 1.600000e+01 : f32
    %53 = vector.broadcast %cst_27 : f32 to vector<1x32xf32>
    %54 = arith.divf %52, %53 : vector<1x32xf32>
    %55 = arith.mulf %50, %50 : vector<16x32xf32>
    %cst_28 = arith.constant dense<0.000000e+00> : vector<32xf32>
    %56 = vector.multi_reduction <add>, %55, %cst_28 [0] : vector<16x32xf32> to vector<32xf32>
    %57 = vector.shape_cast %56 : vector<32xf32> to vector<1x32xf32>
    %cst_29 = arith.constant 1.600000e+01 : f32
    %58 = vector.broadcast %cst_29 : f32 to vector<1x32xf32>
    %59 = arith.divf %57, %58 : vector<1x32xf32>
    %60 = arith.mulf %54, %54 : vector<1x32xf32>
    %61 = arith.subf %59, %60 : vector<1x32xf32>
    %cst_30 = arith.constant 0.000000e+00 : f32
    %62 = vector.broadcast %cst_30 : f32 to vector<1x32xf32>
    %63 = arith.maximumf %61, %62 : vector<1x32xf32>
    %64 = vector.broadcast %54 : vector<1x32xf32> to vector<16x32xf32>
    %65 = arith.subf %50, %64 : vector<16x32xf32>
    %cst_31 = arith.constant 9.99999974E-6 : f32
    %66 = vector.broadcast %cst_31 : f32 to vector<1x32xf32>
    %67 = arith.addf %63, %66 : vector<1x32xf32>
    %68 = math.rsqrt %67 : vector<1x32xf32>
    %69 = vector.broadcast %68 : vector<1x32xf32> to vector<16x32xf32>
    %70 = arith.mulf %65, %69 : vector<16x32xf32>
    %71 = vector.broadcast %46 : vector<1x32xf32> to vector<16x32xf32>
    %72 = arith.mulf %70, %71 : vector<16x32xf32>
    %73 = vector.broadcast %47 : vector<1x32xf32> to vector<16x32xf32>
    %74 = arith.addf %72, %73 : vector<16x32xf32>
    %cst_32 = arith.constant 0.000000e+00 : f32
    %75 = vector.broadcast %cst_32 : f32 to vector<16x32xf32>
    %76 = arith.cmpf oge, %74, %75 : vector<16x32xf32>
    %77 = vector.broadcast %48 : vector<1x32xf32> to vector<16x32xf32>
    %78 = arith.mulf %77, %74 : vector<16x32xf32>
    %79 = arith.select %76, %74, %78 : vector<16x32xi1>, vector<16x32xf32>
    %80 = vector.extract_strided_slice %79 {offsets = [0, 0], sizes = [16, 16], strides = [1, 1]} : vector<16x32xf32> to vector<16x16xf32>
    %81 = vector.extract_strided_slice %79 {offsets = [0, 16], sizes = [16, 16], strides = [1, 1]} : vector<16x32xf32> to vector<16x16xf32>
    %c8 = arith.constant 8 : index
    %c0_33 = arith.constant 0 : index
    %82 = vector.load %arg6[%c8, %c0_33] : memref<13x64xf32, #tpu.memory_space<vmem>>, vector<1x32xf32>
    %c9 = arith.constant 9 : index
    %c0_34 = arith.constant 0 : index
    %83 = vector.load %arg6[%c9, %c0_34] : memref<13x64xf32, #tpu.memory_space<vmem>>, vector<1x32xf32>
    %c10 = arith.constant 10 : index
    %c0_35 = arith.constant 0 : index
    %84 = vector.load %arg6[%c10, %c0_35] : memref<13x64xf32, #tpu.memory_space<vmem>>, vector<1x32xf32>
    %c11 = arith.constant 11 : index
    %c0_36 = arith.constant 0 : index
    %85 = vector.load %arg6[%c11, %c0_36] : memref<13x64xf32, #tpu.memory_space<vmem>>, vector<1x32xf32>
    %c12 = arith.constant 12 : index
    %c0_37 = arith.constant 0 : index
    %86 = vector.load %arg6[%c12, %c0_37] : memref<13x64xf32, #tpu.memory_space<vmem>>, vector<1x16xf32>
    %c0_38 = arith.constant 0 : index
    %c0_39 = arith.constant 0 : index
    %87 = vector.load %arg4[%c0_38, %c0_39] : memref<16x32xf32, #tpu.memory_space<vmem>>, vector<16x32xf32>
    %cst_40 = arith.constant dense<0.000000e+00> : vector<16x32xf32>
    %88 = tpu.matmul %80, %87, %cst_40 {dimension_numbers = #tpu.dot_dimension_numbers<[1], [0], [0], [1], [0, 0, 1, 1], [], []>} : vector<16x16xf32>, vector<16x32xf32>, vector<16x32xf32> -> vector<16x32xf32>
    %89 = vector.broadcast %82 : vector<1x32xf32> to vector<16x32xf32>
    %90 = arith.addf %88, %89 : vector<16x32xf32>
    %cst_41 = arith.constant dense<0.000000e+00> : vector<32xf32>
    %91 = vector.multi_reduction <add>, %90, %cst_41 [0] : vector<16x32xf32> to vector<32xf32>
    %92 = vector.shape_cast %91 : vector<32xf32> to vector<1x32xf32>
    %cst_42 = arith.constant 1.600000e+01 : f32
    %93 = vector.broadcast %cst_42 : f32 to vector<1x32xf32>
    %94 = arith.divf %92, %93 : vector<1x32xf32>
    %95 = arith.mulf %90, %90 : vector<16x32xf32>
    %cst_43 = arith.constant dense<0.000000e+00> : vector<32xf32>
    %96 = vector.multi_reduction <add>, %95, %cst_43 [0] : vector<16x32xf32> to vector<32xf32>
    %97 = vector.shape_cast %96 : vector<32xf32> to vector<1x32xf32>
    %cst_44 = arith.constant 1.600000e+01 : f32
    %98 = vector.broadcast %cst_44 : f32 to vector<1x32xf32>
    %99 = arith.divf %97, %98 : vector<1x32xf32>
    %100 = arith.mulf %94, %94 : vector<1x32xf32>
    %101 = arith.subf %99, %100 : vector<1x32xf32>
    %cst_45 = arith.constant 0.000000e+00 : f32
    %102 = vector.broadcast %cst_45 : f32 to vector<1x32xf32>
    %103 = arith.maximumf %101, %102 : vector<1x32xf32>
    %104 = vector.broadcast %94 : vector<1x32xf32> to vector<16x32xf32>
    %105 = arith.subf %90, %104 : vector<16x32xf32>
    %cst_46 = arith.constant 9.99999974E-6 : f32
    %106 = vector.broadcast %cst_46 : f32 to vector<1x32xf32>
    %107 = arith.addf %103, %106 : vector<1x32xf32>
    %108 = math.rsqrt %107 : vector<1x32xf32>
    %109 = vector.broadcast %108 : vector<1x32xf32> to vector<16x32xf32>
    %110 = arith.mulf %105, %109 : vector<16x32xf32>
    %111 = vector.broadcast %83 : vector<1x32xf32> to vector<16x32xf32>
    %112 = arith.mulf %110, %111 : vector<16x32xf32>
    %113 = vector.broadcast %84 : vector<1x32xf32> to vector<16x32xf32>
    %114 = arith.addf %112, %113 : vector<16x32xf32>
    %cst_47 = arith.constant 0.000000e+00 : f32
    %115 = vector.broadcast %cst_47 : f32 to vector<16x32xf32>
    %116 = arith.cmpf oge, %114, %115 : vector<16x32xf32>
    %117 = vector.broadcast %85 : vector<1x32xf32> to vector<16x32xf32>
    %118 = arith.mulf %117, %114 : vector<16x32xf32>
    %119 = arith.select %116, %114, %118 : vector<16x32xi1>, vector<16x32xf32>
    %c0_48 = arith.constant 0 : index
    %c0_49 = arith.constant 0 : index
    %120 = vector.load %arg5[%c0_48, %c0_49] : memref<32x16xf32, #tpu.memory_space<vmem>>, vector<32x16xf32>
    %cst_50 = arith.constant dense<0.000000e+00> : vector<16x16xf32>
    %121 = tpu.matmul %119, %120, %cst_50 {dimension_numbers = #tpu.dot_dimension_numbers<[1], [0], [0], [1], [0, 0, 1, 1], [], []>} : vector<16x32xf32>, vector<32x16xf32>, vector<16x16xf32> -> vector<16x16xf32>
    %122 = vector.broadcast %86 : vector<1x16xf32> to vector<16x16xf32>
    %123 = arith.addf %121, %122 : vector<16x16xf32>
    %124 = arith.mulf %80, %80 : vector<16x16xf32>
    %cst_51 = arith.constant dense<0.000000e+00> : vector<16xf32>
    %125 = vector.multi_reduction <add>, %124, %cst_51 [1] : vector<16x16xf32> to vector<16xf32>
    %126 = vector.shape_cast %125 : vector<16xf32> to vector<16x1xf32>
    %cst_52 = arith.constant 1.000000e-24 : f32
    %127 = vector.broadcast %cst_52 : f32 to vector<16x1xf32>
    %128 = arith.maximumf %126, %127 : vector<16x1xf32>
    %129 = math.rsqrt %128 : vector<16x1xf32>
    %130 = vector.broadcast %129 : vector<16x1xf32> to vector<16x16xf32>
    %131 = arith.mulf %80, %130 : vector<16x16xf32>
    %132 = arith.mulf %81, %81 : vector<16x16xf32>
    %cst_53 = arith.constant dense<0.000000e+00> : vector<16xf32>
    %133 = vector.multi_reduction <add>, %132, %cst_53 [1] : vector<16x16xf32> to vector<16xf32>
    %134 = vector.shape_cast %133 : vector<16xf32> to vector<16x1xf32>
    %cst_54 = arith.constant 1.000000e-24 : f32
    %135 = vector.broadcast %cst_54 : f32 to vector<16x1xf32>
    %136 = arith.maximumf %134, %135 : vector<16x1xf32>
    %137 = math.rsqrt %136 : vector<16x1xf32>
    %138 = vector.broadcast %137 : vector<16x1xf32> to vector<16x16xf32>
    %139 = arith.mulf %81, %138 : vector<16x16xf32>
    %140 = arith.mulf %123, %123 : vector<16x16xf32>
    %cst_55 = arith.constant dense<0.000000e+00> : vector<16xf32>
    %141 = vector.multi_reduction <add>, %140, %cst_55 [1] : vector<16x16xf32> to vector<16xf32>
    %142 = vector.shape_cast %141 : vector<16xf32> to vector<16x1xf32>
    %cst_56 = arith.constant 1.000000e-24 : f32
    %143 = vector.broadcast %cst_56 : f32 to vector<16x1xf32>
    %144 = arith.maximumf %142, %143 : vector<16x1xf32>
    %145 = math.rsqrt %144 : vector<16x1xf32>
    %146 = vector.broadcast %145 : vector<16x1xf32> to vector<16x16xf32>
    %147 = arith.mulf %123, %146 : vector<16x16xf32>
    %148 = arith.truncf %131 : vector<16x16xf32> to vector<16x16xbf16>
    %149 = arith.truncf %139 : vector<16x16xf32> to vector<16x16xbf16>
    %cst_57 = arith.constant dense<0.000000e+00> : vector<16x16xf32>
    %150 = tpu.matmul %148, %149, %cst_57 {dimension_numbers = #tpu.dot_dimension_numbers<[1], [1], [0], [0], [0, 0, 1, 0], [], []>} : vector<16x16xbf16>, vector<16x16xbf16>, vector<16x16xf32> -> vector<16x16xf32>
    %c0_58 = arith.constant 0 : index
    %c0_59 = arith.constant 0 : index
    %151 = vector.load %arg8[%c0_58, %c0_59] : memref<16x16xf32, #tpu.memory_space<vmem>>, vector<16x16xf32>
    tpu.vector_store %arg8[%c0_58, %c0_59], %150 {strides = array<i32>} : memref<16x16xf32, #tpu.memory_space<vmem>>, vector<16x16xf32>,
    %c0_60 = arith.constant 0 : index
    %c0_61 = arith.constant 0 : index
    %152 = vector.load %arg7[%c0_60, %c0_61] : memref<3x16xf32, #tpu.memory_space<vmem>>, vector<3x16xf32>
    %153 = arith.mulf %80, %80 : vector<16x16xf32>
    %cst_62 = arith.constant dense<0.000000e+00> : vector<16xf32>
    %154 = vector.multi_reduction <add>, %153, %cst_62 [1] : vector<16x16xf32> to vector<16xf32>
    %155 = vector.shape_cast %154 : vector<16xf32> to vector<16x1xf32>
    %156 = arith.mulf %152, %152 : vector<3x16xf32>
    %cst_63 = arith.constant dense<0.000000e+00> : vector<3xf32>
    %157 = vector.multi_reduction <add>, %156, %cst_63 [1] : vector<3x16xf32> to vector<3xf32>
    %158 = vector.shape_cast %157 : vector<3xf32> to vector<1x3xf32>
    %cst_64 = arith.constant dense<0.000000e+00> : vector<16x3xf32>
    %159 = tpu.matmul %80, %152, %cst_64 {dimension_numbers = #tpu.dot_dimension_numbers<[1], [1], [0], [0], [0, 0, 1, 0], [], []>} : vector<16x16xf32>, vector<3x16xf32>, vector<16x3xf32> -> vector<16x3xf32>
    %160 = vector.broadcast %155 : vector<16x1xf32> to vector<16x3xf32>
    %161 = vector.broadcast %158 : vector<1x3xf32> to vector<16x3xf32>
    %162 = arith.addf %160, %161 : vector<16x3xf32>
    %cst_65 = arith.constant 2.000000e+00 : f32
    %163 = vector.broadcast %cst_65 : f32 to vector<16x3xf32>
    %164 = arith.mulf %163, %159 : vector<16x3xf32>
    %165 = arith.subf %162, %164 : vector<16x3xf32>
    %cst_66 = arith.constant 0.000000e+00 : f32
    %166 = vector.broadcast %cst_66 : f32 to vector<16x3xf32>
    %167 = arith.maximumf %165, %166 : vector<16x3xf32>
    %cst_67 = arith.constant 5.000000e+00 : f32
    %168 = vector.broadcast %cst_67 : f32 to vector<16x3xf32>
    %169 = arith.mulf %167, %168 : vector<16x3xf32>
    %cst_68 = arith.constant 1.000000e+00 : f32
    %170 = vector.broadcast %cst_68 : f32 to vector<16x3xf32>
    %171 = arith.addf %170, %169 : vector<16x3xf32>
    %cst_69 = arith.constant 9.99999993E-9 : f32
    %172 = vector.broadcast %cst_69 : f32 to vector<16x3xf32>
    %173 = arith.addf %171, %172 : vector<16x3xf32>
    %174 = tpu.reciprocal %173 {approx = true} : vector<16x3xf32> -> vector<16x3xf32>
    %175 = math.log %174 : vector<16x3xf32>
    %cst_70 = arith.constant 1.200000e+00 : f32
    %176 = vector.broadcast %cst_70 : f32 to vector<16x3xf32>
    %177 = arith.mulf %176, %175 : vector<16x3xf32>
    %178 = math.exp %177 : vector<16x3xf32>
    %cst_71 = arith.constant dense<0.000000e+00> : vector<16xf32>
    %179 = vector.multi_reduction <add>, %178, %cst_71 [1] : vector<16x3xf32> to vector<16xf32>
    %180 = vector.shape_cast %179 : vector<16xf32> to vector<16x1xf32>
    %181 = tpu.reciprocal %180 {approx = true} : vector<16x1xf32> -> vector<16x1xf32>
    %182 = vector.broadcast %181 : vector<16x1xf32> to vector<16x3xf32>
    %183 = arith.mulf %178, %182 : vector<16x3xf32>
    %c0_72 = arith.constant 0 : index
    %c0_73 = arith.constant 0 : index
    %184 = vector.load %arg9[%c0_72, %c0_73] : memref<16x51xf32, #tpu.memory_space<vmem>>, vector<16x16xf32>
    tpu.vector_store %arg9[%c0_72, %c0_73], %80 {strides = array<i32>} : memref<16x51xf32, #tpu.memory_space<vmem>>, vector<16x16xf32>,
    %c0_74 = arith.constant 0 : index
    %c16 = arith.constant 16 : index
    %185 = vector.load %arg9[%c0_74, %c16] : memref<16x51xf32, #tpu.memory_space<vmem>>, vector<16x16xf32>
    tpu.vector_store %arg9[%c0_74, %c16], %147 {strides = array<i32>} : memref<16x51xf32, #tpu.memory_space<vmem>>, vector<16x16xf32>,
    %c0_75 = arith.constant 0 : index
    %c32 = arith.constant 32 : index
    %186 = vector.load %arg9[%c0_75, %c32] : memref<16x51xf32, #tpu.memory_space<vmem>>, vector<16x16xf32>
    tpu.vector_store %arg9[%c0_75, %c32], %139 {strides = array<i32>} : memref<16x51xf32, #tpu.memory_space<vmem>>, vector<16x16xf32>,
    %c0_76 = arith.constant 0 : index
    %c48 = arith.constant 48 : index
    %187 = vector.load %arg9[%c0_76, %c48] : memref<16x51xf32, #tpu.memory_space<vmem>>, vector<16x3xf32>
    tpu.vector_store %arg9[%c0_76, %c48], %183 {strides = array<i32>} : memref<16x51xf32, #tpu.memory_space<vmem>>, vector<16x3xf32>,
    return
  }
}

module attributes {stable_mosaic.version = 11 : i64} {
  func.func @_loss_reduce_kernel(%arg0: memref<16x16xf32, #tpu.memory_space<vmem>>, %arg1: memref<16x32xf32, #tpu.memory_space<vmem>>, %arg2: memref<1x1xf32, #tpu.memory_space<vmem>>) attributes {dimension_semantics = [], scalar_prefetch = 0 : i64, scratch_operands = 0 : i64, tpu.core_type = #tpu.core_type<tc>} {
    %c0 = arith.constant 0 : index
    %c0_0 = arith.constant 0 : index
    %0 = vector.load %arg0[%c0, %c0_0] : memref<16x16xf32, #tpu.memory_space<vmem>>, vector<16x16xf32>
    %c0_1 = arith.constant 0 : index
    %c0_2 = arith.constant 0 : index
    %1 = vector.load %arg1[%c0_1, %c0_2] : memref<16x32xf32, #tpu.memory_space<vmem>>, vector<16x32xf32>
    %cst = arith.constant dense<0.000000e+00> : vector<16x32xf32>
    %2 = tpu.matmul %0, %1, %cst {dimension_numbers = #tpu.dot_dimension_numbers<[1], [0], [0], [1], [0, 0, 1, 1], [], []>} : vector<16x16xf32>, vector<16x32xf32>, vector<16x32xf32> -> vector<16x32xf32>
    %3 = vector.extract_strided_slice %1 {offsets = [0, 16], sizes = [16, 16], strides = [1, 1]} : vector<16x32xf32> to vector<16x16xf32>
    %4 = vector.extract_strided_slice %2 {offsets = [0, 0], sizes = [16, 16], strides = [1, 1]} : vector<16x32xf32> to vector<16x16xf32>
    %5 = arith.mulf %3, %4 : vector<16x16xf32>
    %6 = vector.extract_strided_slice %1 {offsets = [0, 0], sizes = [16, 16], strides = [1, 1]} : vector<16x32xf32> to vector<16x16xf32>
    %7 = vector.extract_strided_slice %2 {offsets = [0, 16], sizes = [16, 16], strides = [1, 1]} : vector<16x32xf32> to vector<16x16xf32>
    %8 = arith.mulf %6, %7 : vector<16x16xf32>
    %9 = arith.addf %5, %8 : vector<16x16xf32>
    %cst_3 = arith.constant dense<0.000000e+00> : vector<16xf32>
    %10 = vector.multi_reduction <add>, %9, %cst_3 [1] : vector<16x16xf32> to vector<16xf32>
    %11 = vector.shape_cast %10 : vector<16xf32> to vector<16x1xf32>
    %cst_4 = arith.constant dense<0.000000e+00> : vector<1xf32>
    %12 = vector.multi_reduction <add>, %11, %cst_4 [0] : vector<16x1xf32> to vector<1xf32>
    %13 = vector.shape_cast %12 : vector<1xf32> to vector<1x1xf32>
    %c0_5 = arith.constant 0 : index
    %c0_6 = arith.constant 0 : index
    %14 = vector.load %arg2[%c0_5, %c0_6] : memref<1x1xf32, #tpu.memory_space<vmem>>, vector<1x1xf32>
    tpu.vector_store %arg2[%c0_5, %c0_6], %13 {strides = array<i32>} : memref<1x1xf32, #tpu.memory_space<vmem>>, vector<1x1xf32>,
    return
  }
}

</mosaic_0001>

<llo_original>
// kernel: mul.54
$region0: #{mul.54}
  #allocation0 [shape = 's32[1]{0}', space=sflag, size = 0x4, scoped, tag = 'scoped memory for mul.54']
  %s0 = inlined_call_operand.vmem [shape: f32[16,16], index: 0, kind: input, shape index: {}]
  %s1 = inlined_call_operand.vmem [shape: f32[16,16], index: 1, kind: input, shape index: {}]
  %s2 = inlined_call_operand.vmem [shape: f32[16,16], index: 2, kind: output, shape index: {}]
  %v3 = vld [vmem:[%s0] sm:$0xff]
  %v4 = vld [vmem:[%s1] sm:$0xff]
  %5 = xla_tuple %v3, %v4
  %6 = xla_tuple %5
  %v7 = vmul.f32 %v3, %v4
  %8 = xla_tuple %v7
  %9 = vst [vmem:[%s2] sm:$0xff] %v7
  %s10 = scalar_lea.vmem %s0, 8
  %v11 = vld [vmem:[%s10] sm:$0xff]
  %s12 = scalar_lea.vmem %s1, 8
  %v13 = vld [vmem:[%s12] sm:$0xff]
  %14 = xla_tuple %v11, %v13
  %15 = xla_tuple %14
  %v16 = vmul.f32 %v11, %v13
  %17 = xla_tuple %v16
  %s18 = scalar_lea.vmem %s2, 8
  %19 = vst [vmem:[%s18] sm:$0xff] %v16

// kernel: simple_afsc_forward.2
$region0: #{simple_afsc_forward.2}
  #allocation0 [shape = 'u32[]', space=smem, size = 0x4, offset = 0x4, fixed_abs, tag = 'smem constant byte address 0x4 - core index']
  #allocation1 [shape = 'u32[72,128]{1,0:T(1,128)}', space=vmem, size = 0x9000, scoped, tag = 'internal scratch']
  %s0 = inlined_call_operand.vmem [shape: bf16[16,16], index: 0, kind: input, shape index: {}]
  %s1 = inlined_call_operand.vmem [shape: f32[16,8], index: 1, kind: input, shape index: {}]
  %s2 = inlined_call_operand.vmem [shape: f32[8,64], index: 2, kind: input, shape index: {}]
  %s3 = inlined_call_operand.vmem [shape: f32[64,32], index: 3, kind: input, shape index: {}]
  %s4 = inlined_call_operand.vmem [shape: f32[16,32], index: 4, kind: input, shape index: {}]
  %s5 = inlined_call_operand.vmem [shape: f32[32,16], index: 5, kind: input, shape index: {}]
  %s6 = inlined_call_operand.vmem [shape: f32[13,64], index: 6, kind: input, shape index: {}]
  %s7 = inlined_call_operand.vmem [shape: f32[3,16], index: 7, kind: input, shape index: {}]
  %s8 = inlined_call_operand.vmem [shape: f32[16,16], index: 8, kind: output, shape index: {0}]
  %s9 = inlined_call_operand.vmem [shape: f32[16,51], index: 9, kind: output, shape index: {1}]
  %10 = xla_tuple %s8, %s9
  %s11 = sld [smem:[#allocation0]]
  $region50: #{simple_afsc_forward.2} parent=0
    _
  %s13 = ssub.s32 1, %s11
  %s14 = scalar_select 0, %s13, %s11
  // Predicated region
  $region2: #{simple_afsc_forward.2} parent=0 // pred_check
    _
  $region3: #{simple_afsc_forward.2} parent=0 // pred_check_branch
    %16 = sbr.rel (0) target = $region5
  $region4: #{simple_afsc_forward.2} parent=0 // pred_region
    _
  $region5: #{simple_afsc_forward.2} parent=0 // pred_fallthru
    _
  // Predicated region
  $region6: #{simple_afsc_forward.2} parent=0 // pred_check
    _
  $region7: #{simple_afsc_forward.2} parent=0 // pred_check_branch
    %18 = sbr.rel (0) target = $region9
  $region8: #{simple_afsc_forward.2} parent=0 // pred_region
    _
  $region9: #{simple_afsc_forward.2} parent=0 // pred_fallthru
    _
  // Predicated region
  $region10: #{simple_afsc_forward.2} parent=0 // pred_check
    _
  $region11: #{simple_afsc_forward.2} parent=0 // pred_check_branch
    %20 = sbr.rel (0) target = $region13
  $region12: #{simple_afsc_forward.2} parent=0 // pred_region
    _
  $region13: #{simple_afsc_forward.2} parent=0 // pred_fallthru
    _
  // Predicated region
  $region14: #{simple_afsc_forward.2} parent=0 // pred_check
    _
  $region15: #{simple_afsc_forward.2} parent=0 // pred_check_branch
    %22 = sbr.rel (0) target = $region17
  $region16: #{simple_afsc_forward.2} parent=0 // pred_region
    _
  $region17: #{simple_afsc_forward.2} parent=0 // pred_fallthru
    _
  // Predicated region
  $region18: #{simple_afsc_forward.2} parent=0 // pred_check
    _
  $region19: #{simple_afsc_forward.2} parent=0 // pred_check_branch
    %24 = sbr.rel (0) target = $region21
  $region20: #{simple_afsc_forward.2} parent=0 // pred_region
    _
  $region21: #{simple_afsc_forward.2} parent=0 // pred_fallthru
    _
  // Predicated region
  $region22: #{simple_afsc_forward.2} parent=0 // pred_check
    _
  $region23: #{simple_afsc_forward.2} parent=0 // pred_check_branch
    %26 = sbr.rel (0) target = $region25
  $region24: #{simple_afsc_forward.2} parent=0 // pred_region
    _
  $region25: #{simple_afsc_forward.2} parent=0 // pred_fallthru
    _
  // Predicated region
  $region26: #{simple_afsc_forward.2} parent=0 // pred_check
    _
  $region27: #{simple_afsc_forward.2} parent=0 // pred_check_branch
    %28 = sbr.rel (0) target = $region29
  $region28: #{simple_afsc_forward.2} parent=0 // pred_region
    _
  $region29: #{simple_afsc_forward.2} parent=0 // pred_fallthru
    _
  // Predicated region
  $region30: #{simple_afsc_forward.2} parent=0 // pred_check
    _
  $region31: #{simple_afsc_forward.2} parent=0 // pred_check_branch
    %30 = sbr.rel (0) target = $region33
  $region32: #{simple_afsc_forward.2} parent=0 // pred_region
    _
  $region33: #{simple_afsc_forward.2} parent=0 // pred_fallthru
    _
  %v32 = vld [vmem:[%s0] sm:$0xf]
  %v33 = vld [vmem:[%s0 + $0x4] sm:$0xf]
  %v34 = vld [vmem:[%s1] sm:$0xff]
  %v35 = vld [vmem:[%s1 + $0x8] sm:$0xff]
  %v36 = vld [vmem:[%s2] sm:$0xff]
  %vm37 = vcmask 64512
  %v39 = vsel %vm37, %v34, 0
  %v42 = vsel %vm37, %v35, 0
  %44 = vmatpush.msra.mxu0 0.0
  %45 = vmatpush.msra.mxu0 0.0
  %46 = vmatpush.msra.mxu0 0.0
  %47 = vmatpush.msra.mxu0 0.0
  %48 = vmatpush.msra.mxu0 0.0
  %49 = vmatpush.msra.mxu0 0.0
  %50 = vmatpush.msra.mxu0 0.0
  %51 = vmatpush.msra.mxu0 0.0
  %52 = vmatpush.msra.mxu0 0.0
  %53 = vmatpush.msra.mxu0 0.0
  %54 = vmatpush.msra.mxu0 0.0
  %55 = vmatpush.msra.mxu0 0.0
  %56 = vmatpush.msra.mxu0 0.0
  %57 = vmatpush.msra.mxu0 0.0
  %58 = vmatpush.msra.mxu0 0.0
  %59 = vmatpush.msra.mxu0 %v36
  %60 = vmatmul.f32.gmra.mxu0 %v39
  %v61 = vpop.f32.mrf.mxu0
  %v62 = vadd.f32 0.0, %v61
  %63 = vmatmul.f32.gmra.mxu0 %v42
  %v64 = vpop.f32.mrf.mxu0
  %v65 = vadd.f32 0.0, %v64
  %66 = vdwg.mxu0
  %v67 = vpack.c.bf16 %v65, %v62
  %v68 = vld [vmem:[%s6] sm:$0x1]
  %v69 = vld [vmem:[%s6 + $0x1] sm:$0x1]
  %v70 = vld [vmem:[%s6 + $0x2] sm:$0x1]
  %v71 = vld [vmem:[%s6 + $0x3] sm:$0x1]
  %v72 = vperm.slane %v68, 0
  %v75 = vunpack.c.l.b16 %v32
  %v76 = vunpack.c.l.b16 %v33
  %v77 = vpack.c.b16 %v76, %v75
  %vm78 = vcmask 130048
  %v80 = vsel %vm78, %v77, 0
  %82 = vmatpush.bf16.msra.mxu0 0
  %83 = vmatpush.bf16.msra.mxu0 0
  %84 = vmatpush.bf16.msra.mxu0 0
  %85 = vmatpush.bf16.msra.mxu0 0
  %86 = vmatpush.bf16.msra.mxu0 0
  %87 = vmatpush.bf16.msra.mxu0 0
  %88 = vmatpush.bf16.msra.mxu0 0
  %89 = vmatpush.bf16.msra.mxu0 %v67
  %90 = vmatmul.bf16.gmra.mxu0 %v80
  %v91 = vpop.f32.mrf.mxu0
  %v92 = vadd.f32 %v72, %v91
  %v93 = vpop.f32.mrf.mxu0
  %v94 = vadd.f32 %v72, %v93
  %95 = vdwg.mxu0
  %vm96 = vcmask 523264
  %v97 = vsel %vm96, %v92, 0.0
  %v98 = vsel %vm96, %v94, 0.0
  %v99 = vadd.f32 %v97, %v98
  %v100 = vrot.slane %v99, 4
  %v101 = vadd.f32 %v99, %v100
  %v102 = vrot.slane %v101, 2
  %v103 = vadd.f32 %v101, %v102
  %v104 = vrot.slane %v103, 1
  %v105 = vadd.f32 %v103, %v104
  %v106 = vrcp.pop 16.0
  %v107 = vmul.f32 16.0, %v106
  %v108 = vsub.f32 1.0, %v107
  %v109 = vmul.f32 %v106, %v108
  %v110 = vadd.f32 %v106, %v109
  %vm111 = vweird.f32 %v106
  %v112 = vsel %vm111, %v106, %v110
  %v113 = vmul.f32 %v105, %v112
  %v114 = vmul.f32 %v92, %v92
  %v115 = vmul.f32 %v94, %v94
  %v116 = vsel %vm96, %v114, 0.0
  %v117 = vsel %vm96, %v115, 0.0
  %v118 = vadd.f32 %v116, %v117
  %v119 = vrot.slane %v118, 4
  %v120 = vadd.f32 %v118, %v119
  %v121 = vrot.slane %v120, 2
  %v122 = vadd.f32 %v120, %v121
  %v123 = vrot.slane %v122, 1
  %v124 = vadd.f32 %v122, %v123
  %v125 = vmul.f32 %v124, %v112
  %v126 = vmul.f32 %v113, %v113
  %v127 = vsub.f32 %v125, %v126
  %v128 = vmax.f32 %v127, 0.0
  %v129 = vsub.f32 %v92, %v113
  %v130 = vsub.f32 %v94, %v113
  %v131 = vadd.f32 %v128, 1e-05
  %v132 = vrsqrt.pop %v131
  %v133 = vmul.f32 %v132, %v131
  %v134 = vmul.f32 %v133, %v132
  %v135 = vmul.f32 0.5, %v134
  %v136 = vsub.f32 1.5, %v135
  %v137 = vmul.f32 %v132, %v136
  %vm138 = vweird.f32 %v131
  %vm139 = vweird.f32 %v132
  %vm140 = vmor %vm138, %vm139
  %v141 = vsel %vm140, %v132, %v137
  %v142 = vmul.f32 %v129, %v141
  %v143 = vmul.f32 %v130, %v141
  %v144 = vperm.slane %v69, 0
  %v145 = vmul.f32 %v142, %v144
  %v146 = vmul.f32 %v143, %v144
  %v147 = vperm.slane %v70, 0
  %v148 = vadd.f32 %v145, %v147
  %v149 = vadd.f32 %v146, %v147
  %vm150 = vcmp.ge.f32.partialorder %v148, 0.0
  %vm151 = vcmp.ge.f32.partialorder %v149, 0.0
  %v152 = vperm.slane %v71, 0
  %v153 = vmul.f32 %v152, %v148
  %v154 = vmul.f32 %v152, %v149
  %v155 = vsel %vm150, %v148, %v153
  %v156 = vsel %vm151, %v149, %v154
  %v157 = vld [vmem:[%s3] sm:$0xff]
  %v158 = vld [vmem:[%s3 + $0x8] sm:$0xff]
  %v159 = vld [vmem:[%s3 + $0x10] sm:$0xff]
  %v160 = vld [vmem:[%s3 + $0x18] sm:$0xff]
  %v161 = vld [vmem:[%s3 + $0x20] sm:$0xff]
  %v162 = vld [vmem:[%s3 + $0x28] sm:$0xff]
  %v163 = vld [vmem:[%s3 + $0x30] sm:$0xff]
  %v164 = vld [vmem:[%s3 + $0x38] sm:$0xff]
  %v166 = vsel %vm96, %v155, 0
  %v169 = vsel %vm96, %v156, 0
  %171 = vmatpush.msra.mxu0 0.0
  %172 = vmatpush.msra.mxu0 0.0
  %173 = vmatpush.msra.mxu0 0.0
  %174 = vmatpush.msra.mxu0 0.0
  %175 = vmatpush.msra.mxu0 0.0
  %176 = vmatpush.msra.mxu0 0.0
  %177 = vmatpush.msra.mxu0 0.0
  %178 = vmatpush.msra.mxu0 0.0
  %179 = vmatpush.msra.mxu0 %v164
  %180 = vmatpush.msra.mxu0 %v163
  %181 = vmatpush.msra.mxu0 %v162
  %182 = vmatpush.msra.mxu0 %v161
  %183 = vmatpush.msra.mxu0 %v160
  %184 = vmatpush.msra.mxu0 %v159
  %185 = vmatpush.msra.mxu0 %v158
  %186 = vmatpush.msra.mxu0 %v157
  %187 = vmatmul.f32.gmra.mxu0 %v166
  %v188 = vpop.f32.mrf.mxu0
  %v189 = vadd.f32 0.0, %v188
  %190 = vmatmul.f32.gmra.mxu0 %v169
  %v191 = vpop.f32.mrf.mxu0
  %v192 = vadd.f32 0.0, %v191
  %193 = vdwg.mxu0
  %v194 = vpack.c.bf16 %v192, %v189
  %v195 = vld [vmem:[%s6 + $0x4] sm:$0x1]
  %v196 = vld [vmem:[%s6 + $0x5] sm:$0x1]
  %v197 = vld [vmem:[%s6 + $0x6] sm:$0x1]
  %v198 = vld [vmem:[%s6 + $0x7] sm:$0x1]
  %v199 = vperm.slane %v195, 0
  %200 = vmatpush.bf16.msra.mxu0 0
  %201 = vmatpush.bf16.msra.mxu0 0
  %202 = vmatpush.bf16.msra.mxu0 0
  %203 = vmatpush.bf16.msra.mxu0 0
  %204 = vmatpush.bf16.msra.mxu0 0
  %205 = vmatpush.bf16.msra.mxu0 0
  %206 = vmatpush.bf16.msra.mxu0 0
  %207 = vmatpush.bf16.msra.mxu0 %v194
  %208 = vmatmul.bf16.gmra.mxu0 %v80
  %v209 = vpop.f32.mrf.mxu0
  %v210 = vadd.f32 %v199, %v209
  %v211 = vpop.f32.mrf.mxu0
  %v212 = vadd.f32 %v199, %v211
  %213 = vdwg.mxu0
  %vm214 = vcmask 261120
  %v215 = vsel %vm214, %v210, 0.0
  %v216 = vsel %vm214, %v212, 0.0
  %v217 = vadd.f32 %v215, %v216
  %v218 = vrot.slane %v217, 4
  %v219 = vadd.f32 %v217, %v218
  %v220 = vrot.slane %v219, 2
  %v221 = vadd.f32 %v219, %v220
  %v222 = vrot.slane %v221, 1
  %v223 = vadd.f32 %v221, %v222
  %v224 = vmul.f32 %v223, %v112
  %v225 = vmul.f32 %v210, %v210
  %v226 = vmul.f32 %v212, %v212
  %v227 = vsel %vm214, %v225, 0.0
  %v228 = vsel %vm214, %v226, 0.0
  %v229 = vadd.f32 %v227, %v228
  %v230 = vrot.slane %v229, 4
  %v231 = vadd.f32 %v229, %v230
  %v232 = vrot.slane %v231, 2
  %v233 = vadd.f32 %v231, %v232
  %v234 = vrot.slane %v233, 1
  %v235 = vadd.f32 %v233, %v234
  %v236 = vmul.f32 %v235, %v112
  %v237 = vmul.f32 %v224, %v224
  %v238 = vsub.f32 %v236, %v237
  %v239 = vmax.f32 %v238, 0.0
  %v240 = vsub.f32 %v210, %v224
  %v241 = vsub.f32 %v212, %v224
  %v242 = vadd.f32 %v239, 1e-05
  %v243 = vrsqrt.pop %v242
  %v244 = vmul.f32 %v243, %v242
  %v245 = vmul.f32 %v244, %v243
  %v246 = vmul.f32 0.5, %v245
  %v247 = vsub.f32 1.5, %v246
  %v248 = vmul.f32 %v243, %v247
  %vm249 = vweird.f32 %v242
  %vm250 = vweird.f32 %v243
  %vm251 = vmor %vm249, %vm250
  %v252 = vsel %vm251, %v243, %v248
  %v253 = vmul.f32 %v240, %v252
  %v254 = vmul.f32 %v241, %v252
  %v255 = vperm.slane %v196, 0
  %v256 = vmul.f32 %v253, %v255
  %v257 = vmul.f32 %v254, %v255
  %v258 = vperm.slane %v197, 0
  %v259 = vadd.f32 %v256, %v258
  %v260 = vadd.f32 %v257, %v258
  %vm261 = vcmp.ge.f32.partialorder %v259, 0.0
  %vm262 = vcmp.ge.f32.partialorder %v260, 0.0
  %v263 = vperm.slane %v198, 0
  %v264 = vmul.f32 %v263, %v259
  %v265 = vmul.f32 %v263, %v260
  %v266 = vsel %vm261, %v259, %v264
  %v267 = vsel %vm262, %v260, %v265
  %v268 = vld [vmem:[%s6 + $0x8] sm:$0x1]
  %v269 = vld [vmem:[%s6 + $0x9] sm:$0x1]
  %v270 = vld [vmem:[%s6 + $0xa] sm:$0x1]
  %v271 = vld [vmem:[%s6 + $0xb] sm:$0x1]
  %v272 = vld [vmem:[%s6 + $0xc] sm:$0x1]
  %v273 = vld [vmem:[%s4] sm:$0xff]
  %v274 = vld [vmem:[%s4 + $0x8] sm:$0xff]
  %v275 = vperm.slane %v268, 0
  %v277 = vsel %vm78, %v266, 0
  %v280 = vsel %vm78, %v267, 0
  %282 = vmatpush.msra.mxu0 0.0
  %283 = vmatpush.msra.mxu0 0.0
  %284 = vmatpush.msra.mxu0 0.0
  %285 = vmatpush.msra.mxu0 0.0
  %286 = vmatpush.msra.mxu0 0.0
  %287 = vmatpush.msra.mxu0 0.0
  %288 = vmatpush.msra.mxu0 0.0
  %289 = vmatpush.msra.mxu0 0.0
  %290 = vmatpush.msra.mxu0 0.0
  %291 = vmatpush.msra.mxu0 0.0
  %292 = vmatpush.msra.mxu0 0.0
  %293 = vmatpush.msra.mxu0 0.0
  %294 = vmatpush.msra.mxu0 0.0
  %295 = vmatpush.msra.mxu0 0.0
  %296 = vmatpush.msra.mxu0 %v274
  %297 = vmatpush.msra.mxu0 %v273
  %298 = vmatmul.f32.gmra.mxu0 %v277
  %v299 = vpop.f32.mrf.mxu0
  %v300 = vadd.f32 %v275, %v299
  %301 = vmatmul.f32.gmra.mxu0 %v280
  %v302 = vpop.f32.mrf.mxu0
  %v303 = vadd.f32 %v275, %v302
  %304 = vdwg.mxu0
  %v305 = vsel %vm214, %v300, 0.0
  %v306 = vsel %vm214, %v303, 0.0
  %v307 = vadd.f32 %v305, %v306
  %v308 = vrot.slane %v307, 4
  %v309 = vadd.f32 %v307, %v308
  %v310 = vrot.slane %v309, 2
  %v311 = vadd.f32 %v309, %v310
  %v312 = vrot.slane %v311, 1
  %v313 = vadd.f32 %v311, %v312
  %v314 = vmul.f32 %v313, %v112
  %v315 = vmul.f32 %v300, %v300
  %v316 = vmul.f32 %v303, %v303
  %v317 = vsel %vm214, %v315, 0.0
  %v318 = vsel %vm214, %v316, 0.0
  %v319 = vadd.f32 %v317, %v318
  %v320 = vrot.slane %v319, 4
  %v321 = vadd.f32 %v319, %v320
  %v322 = vrot.slane %v321, 2
  %v323 = vadd.f32 %v321, %v322
  %v324 = vrot.slane %v323, 1
  %v325 = vadd.f32 %v323, %v324
  %v326 = vmul.f32 %v325, %v112
  %v327 = vmul.f32 %v314, %v314
  %v328 = vsub.f32 %v326, %v327
  %v329 = vmax.f32 %v328, 0.0
  %v330 = vsub.f32 %v300, %v314
  %v331 = vsub.f32 %v303, %v314
  %v332 = vadd.f32 %v329, 1e-05
  %v333 = vrsqrt.pop %v332
  %v334 = vmul.f32 %v333, %v332
  %v335 = vmul.f32 %v334, %v333
  %v336 = vmul.f32 0.5, %v335
  %v337 = vsub.f32 1.5, %v336
  %v338 = vmul.f32 %v333, %v337
  %vm339 = vweird.f32 %v332
  %vm340 = vweird.f32 %v333
  %vm341 = vmor %vm339, %vm340
  %v342 = vsel %vm341, %v333, %v338
  %v343 = vmul.f32 %v330, %v342
  %v344 = vmul.f32 %v331, %v342
  %v345 = vperm.slane %v269, 0
  %v346 = vmul.f32 %v343, %v345
  %v347 = vmul.f32 %v344, %v345
  %v348 = vperm.slane %v270, 0
  %v349 = vadd.f32 %v346, %v348
  %v350 = vadd.f32 %v347, %v348
  %vm351 = vcmp.ge.f32.partialorder %v349, 0.0
  %vm352 = vcmp.ge.f32.partialorder %v350, 0.0
  %v353 = vperm.slane %v271, 0
  %v354 = vmul.f32 %v353, %v349
  %v355 = vmul.f32 %v353, %v350
  %v356 = vsel %vm351, %v349, %v354
  %v357 = vsel %vm352, %v350, %v355
  %v358 = vld [vmem:[%s5] sm:$0xff]
  %v359 = vld [vmem:[%s5 + $0x8] sm:$0xff]
  %v360 = vld [vmem:[%s5 + $0x10] sm:$0xff]
  %v361 = vld [vmem:[%s5 + $0x18] sm:$0xff]
  %v362 = vperm.slane %v272, 0
  %v364 = vsel %vm214, %v356, 0
  %v367 = vsel %vm214, %v357, 0
  %369 = vmatpush.msra.mxu0 0.0
  %370 = vmatpush.msra.mxu0 0.0
  %371 = vmatpush.msra.mxu0 0.0
  %372 = vmatpush.msra.mxu0 0.0
  %373 = vmatpush.msra.mxu0 0.0
  %374 = vmatpush.msra.mxu0 0.0
  %375 = vmatpush.msra.mxu0 0.0
  %376 = vmatpush.msra.mxu0 0.0
  %377 = vmatpush.msra.mxu0 0.0
  %378 = vmatpush.msra.mxu0 0.0
  %379 = vmatpush.msra.mxu0 0.0
  %380 = vmatpush.msra.mxu0 0.0
  %381 = vmatpush.msra.mxu0 %v361
  %382 = vmatpush.msra.mxu0 %v360
  %383 = vmatpush.msra.mxu0 %v359
  %384 = vmatpush.msra.mxu0 %v358
  %385 = vmatmul.f32.gmra.mxu0 %v364
  %v386 = vpop.f32.mrf.mxu0
  %v387 = vadd.f32 %v362, %v386
  %388 = vmatmul.f32.gmra.mxu0 %v367
  %v389 = vpop.f32.mrf.mxu0
  %v390 = vadd.f32 %v362, %v389
  %391 = vdwg.mxu0
  %v392 = vmul.f32 %v266, %v266
  %v393 = vmul.f32 %v267, %v267
  %v394 = vsel %vm78, %v392, 0.0
  %395 = vadd.xlane.f32.xlu0 %v394
  %v396 = vpop.xlane.xlu0 %395
  %v397 = vsel %vm78, %v393, 0.0
  %398 = vadd.xlane.f32.xlu0 %v397
  %v399 = vpop.xlane.xlu0 %398
  %v400 = vmax.f32 %v396, 1e-24
  %v401 = vmax.f32 %v399, 1e-24
  %v402 = vrsqrt.pop %v400
  %v403 = vmul.f32 %v402, %v400
  %v404 = vmul.f32 %v403, %v402
  %v405 = vmul.f32 0.5, %v404
  %v406 = vsub.f32 1.5, %v405
  %v407 = vmul.f32 %v402, %v406
  %vm408 = vweird.f32 %v400
  %vm409 = vweird.f32 %v402
  %vm410 = vmor %vm408, %vm409
  %v411 = vsel %vm410, %v402, %v407
  %v412 = vrsqrt.pop %v401
  %v413 = vmul.f32 %v412, %v401
  %v414 = vmul.f32 %v413, %v412
  %v415 = vmul.f32 0.5, %v414
  %v416 = vsub.f32 1.5, %v415
  %v417 = vmul.f32 %v412, %v416
  %vm418 = vweird.f32 %v401
  %vm419 = vweird.f32 %v412
  %vm420 = vmor %vm418, %vm419
  %v421 = vsel %vm420, %v412, %v417
  %v422 = vmul.f32 %v266, %v411
  %v423 = vmul.f32 %v267, %v421
  %426 = vrot.lane.b32.xlu0 %v392, 112
  %v427 = vpop.permute.xlu0 %426
  %428 = vrot.lane.b32.xlu0 %v393, 112
  %v429 = vpop.permute.xlu0 %428
  %v432 = vsel %vm78, %v427, 0.0
  %433 = vadd.xlane.f32.xlu0 %v432
  %v434 = vpop.xlane.xlu0 %433
  %v435 = vsel %vm78, %v429, 0.0
  %436 = vadd.xlane.f32.xlu0 %v435
  %v437 = vpop.xlane.xlu0 %436
  %v438 = vmax.f32 %v434, 1e-24
  %v439 = vmax.f32 %v437, 1e-24
  %v440 = vrsqrt.pop %v438
  %v441 = vmul.f32 %v440, %v438
  %v442 = vmul.f32 %v441, %v440
  %v443 = vmul.f32 0.5, %v442
  %v444 = vsub.f32 1.5, %v443
  %v445 = vmul.f32 %v440, %v444
  %vm446 = vweird.f32 %v438
  %vm447 = vweird.f32 %v440
  %vm448 = vmor %vm446, %vm447
  %v449 = vsel %vm448, %v440, %v445
  %v450 = vrsqrt.pop %v439
  %v451 = vmul.f32 %v450, %v439
  %v452 = vmul.f32 %v451, %v450
  %v453 = vmul.f32 0.5, %v452
  %v454 = vsub.f32 1.5, %v453
  %v455 = vmul.f32 %v450, %v454
  %vm456 = vweird.f32 %v439
  %vm457 = vweird.f32 %v450
  %vm458 = vmor %vm456, %vm457
  %v459 = vsel %vm458, %v450, %v455
  %v460 = vmul.f32 %v266, %v449
  %v461 = vmul.f32 %v267, %v459
  %v462 = vmul.f32 %v387, %v387
  %v463 = vmul.f32 %v390, %v390
  %v464 = vsel %vm78, %v462, 0.0
  %465 = vadd.xlane.f32.xlu0 %v464
  %v466 = vpop.xlane.xlu0 %465
  %v467 = vsel %vm78, %v463, 0.0
  %468 = vadd.xlane.f32.xlu0 %v467
  %v469 = vpop.xlane.xlu0 %468
  %v470 = vmax.f32 %v466, 1e-24
  %v471 = vmax.f32 %v469, 1e-24
  %v472 = vrsqrt.pop %v470
  %v473 = vmul.f32 %v472, %v470
  %v474 = vmul.f32 %v473, %v472
  %v475 = vmul.f32 0.5, %v474
  %v476 = vsub.f32 1.5, %v475
  %v477 = vmul.f32 %v472, %v476
  %vm478 = vweird.f32 %v470
  %vm479 = vweird.f32 %v472
  %vm480 = vmor %vm478, %vm479
  %v481 = vsel %vm480, %v472, %v477
  %v482 = vrsqrt.pop %v471
  %v483 = vmul.f32 %v482, %v471
  %v484 = vmul.f32 %v483, %v482
  %v485 = vmul.f32 0.5, %v484
  %v486 = vsub.f32 1.5, %v485
  %v487 = vmul.f32 %v482, %v486
  %vm488 = vweird.f32 %v471
  %vm489 = vweird.f32 %v482
  %vm490 = vmor %vm488, %vm489
  %v491 = vsel %vm490, %v482, %v487
  %v492 = vmul.f32 %v387, %v481
  %v493 = vmul.f32 %v390, %v491
  %v494 = vpack.c.bf16 %v423, %v422
  %v495 = vpack.c.bf16 %v461, %v460
  %497 = vrot.lane.b32.xlu0 %v495, 112
  %v498 = vpop.permute.xlu0 %497
  %v500 = vsel %vm78, %v494, 0
  %v503 = vsel %vm78, %v498, 0
  %505 = vmatpush.bf16.xpose.msra.mxu0 0
  %506 = vmatpush.bf16.xpose.msra.mxu0 0
  %507 = vmatpush.bf16.xpose.msra.mxu0 0
  %508 = vmatpush.bf16.xpose.msra.mxu0 0
  %509 = vmatpush.bf16.xpose.msra.mxu0 0
  %510 = vmatpush.bf16.xpose.msra.mxu0 0
  %511 = vmatpush.bf16.xpose.msra.mxu0 0
  %512 = vmatpush.bf16.xpose.msra.mxu0 %v503
  %513 = vmatmul.bf16.gmra.mxu0 %v500
  %v514 = vpop.f32.mrf.mxu0
  %v515 = vadd.f32 0.0, %v514
  %v516 = vpop.f32.mrf.mxu0
  %v517 = vadd.f32 0.0, %v516
  %518 = vdwg.mxu0
  %519 = vst.msk [vmem:[%s8] sm:$0xff] %vm78, %v515
  %520 = vst.msk [vmem:[%s8 + $0x8] sm:$0xff] %vm78, %v517
  %v521 = vld [vmem:[%s7] sm:$0x7]
  %v522 = vmul.f32 %v521, %v521
  %vm523 = vcmask 124928
  %v524 = vsel %vm523, %v522, 0.0
  %525 = vadd.xlane.f32.xlu0 %v524
  %v526 = vpop.xlane.xlu0 %525
  %v528 = vsel %vm78, %v521, 0
  %530 = vmatpush.xpose.msra.mxu0 0.0
  %531 = vmatpush.xpose.msra.mxu0 0.0
  %532 = vmatpush.xpose.msra.mxu0 0.0
  %533 = vmatpush.xpose.msra.mxu0 0.0
  %534 = vmatpush.xpose.msra.mxu0 0.0
  %535 = vmatpush.xpose.msra.mxu0 0.0
  %536 = vmatpush.xpose.msra.mxu0 0.0
  %537 = vmatpush.xpose.msra.mxu0 0.0
  %538 = vmatpush.xpose.msra.mxu0 0.0
  %539 = vmatpush.xpose.msra.mxu0 0.0
  %540 = vmatpush.xpose.msra.mxu0 0.0
  %541 = vmatpush.xpose.msra.mxu0 0.0
  %542 = vmatpush.xpose.msra.mxu0 0.0
  %543 = vmatpush.xpose.msra.mxu0 0.0
  %544 = vmatpush.xpose.msra.mxu0 0.0
  %545 = vmatpush.xpose.msra.mxu0 %v528
  %546 = vmatmul.f32.gmra.mxu0 %v277
  %v547 = vpop.f32.mrf.mxu0
  %v548 = vadd.f32 0.0, %v547
  %549 = vmatmul.f32.gmra.mxu0 %v280
  %v550 = vpop.f32.mrf.mxu0
  %v551 = vadd.f32 0.0, %v550
  %552 = vdwg.mxu0
  %v554 = vlaneseq
  %v555 = vand.u32 %v554, 127
  %v556 = vperm.slane %v526, %v555
  %vm557 = vcmask 1042434
  %v558 = vsel %vm557, %v556, %v556
  %vm559 = vcmask 1043459
  %v560 = vsel %vm559, %v556, %v558
  %vm561 = vcmask 1044484
  %v562 = vsel %vm561, %v556, %v560
  %vm563 = vcmask 1045509
  %v564 = vsel %vm563, %v556, %v562
  %vm565 = vcmask 1046534
  %v566 = vsel %vm565, %v556, %v564
  %vm567 = vcmask 1047559
  %v568 = vsel %vm567, %v556, %v566
  %v570 = vadd.f32 %v396, %v568
  %v571 = vadd.f32 %v399, %v568
  %v572 = vmul.f32 %v548, 2.0
  %v573 = vmul.f32 %v551, 2.0
  %v574 = vsub.f32 %v570, %v572
  %v575 = vsub.f32 %v571, %v573
  %v576 = vmax.f32 %v574, 0.0
  %v577 = vmax.f32 %v575, 0.0
  %v578 = vmul.f32 %v576, 5.0
  %v579 = vmul.f32 %v577, 5.0
  %v580 = vadd.f32 %v578, 1.0
  %v581 = vadd.f32 %v579, 1.0
  %v582 = vadd.f32 %v580, 1e-08
  %v583 = vadd.f32 %v581, 1e-08
  %v584 = vrcp.pop %v582
  %v585 = vrcp.pop %v583
  %v586 = vlog2.pop %v584
  %v587 = vmul.f32 %v586, 0.6931472
  %v588 = vlog2.pop %v585
  %v589 = vmul.f32 %v588, 0.6931472
  %v590 = vmul.f32 %v587, 1.2
  %v591 = vmul.f32 %v589, 1.2
  %v592 = vmul.f32 %v590, 1.442695
  %v593 = vpow.pop %v592
  %v594 = vmul.f32 %v591, 1.442695
  %v595 = vpow.pop %v594
  %vm596 = vcmask 23552
  %v597 = vsel %vm596, %v593, 0.0
  %598 = vadd.xlane.f32.xlu0 %v597
  %v599 = vpop.xlane.xlu0 %598
  %v600 = vsel %vm596, %v595, 0.0
  %601 = vadd.xlane.f32.xlu0 %v600
  %v602 = vpop.xlane.xlu0 %601
  %v603 = vrcp.pop %v599
  %v604 = vrcp.pop %v602
  %v605 = vmul.f32 %v593, %v603
  %v606 = vmul.f32 %v595, %v604
  %607 = vst.msk [vmem:[%s9] sm:$0xff] %vm78, %v266
  %608 = vst.msk [vmem:[%s9 + $0x8] sm:$0xff] %vm78, %v267
  %611 = vrot.lane.b32.xlu0 %v492, 16
  %v612 = vpop.permute.xlu0 %611
  %613 = vrot.lane.b32.xlu0 %v493, 16
  %v614 = vpop.permute.xlu0 %613
  %vm617 = vcmask 261248
  %618 = vst.msk [vmem:[%s9] sm:$0xff] %vm617, %v612
  %619 = vst.msk [vmem:[%s9 + $0x8] sm:$0xff] %vm617, %v614
  %622 = vrot.lane.b32.xlu0 %v460, 16
  %v623 = vpop.permute.xlu0 %622
  %624 = vrot.lane.b32.xlu0 %v461, 16
  %v625 = vpop.permute.xlu0 %624
  %vm628 = vcmask 392448
  %629 = vst.msk [vmem:[%s9] sm:$0xff] %vm628, %v623
  %630 = vst.msk [vmem:[%s9 + $0x8] sm:$0xff] %vm628, %v625
  %633 = vrot.lane.b32.xlu0 %v605, 48
  %v634 = vpop.permute.xlu0 %633
  %635 = vrot.lane.b32.xlu0 %v606, 48
  %v636 = vpop.permute.xlu0 %635
  %vm639 = vcmask 417152
  %640 = vst.msk [vmem:[%s9] sm:$0xff] %vm639, %v634
  %641 = vst.msk [vmem:[%s9 + $0x8] sm:$0xff] %vm639, %v636
  // Predicated region
  $region34: #{simple_afsc_forward.2} parent=0 // pred_check
    _
  $region35: #{simple_afsc_forward.2} parent=0 // pred_check_branch
    %643 = sbr.rel (0) target = $region37
  $region36: #{simple_afsc_forward.2} parent=0 // pred_region
    _
  $region37: #{simple_afsc_forward.2} parent=0 // pred_fallthru
    _
  // Predicated region
  $region38: #{simple_afsc_forward.2} parent=0 // pred_check
    _
  $region39: #{simple_afsc_forward.2} parent=0 // pred_check_branch
    %645 = sbr.rel (0) target = $region41
  $region40: #{simple_afsc_forward.2} parent=0 // pred_region
    _
  $region41: #{simple_afsc_forward.2} parent=0 // pred_fallthru
    _
  // Predicated region
  $region42: #{simple_afsc_forward.2} parent=0 // pred_check
    _
  $region43: #{simple_afsc_forward.2} parent=0 // pred_check_branch
    %647 = sbr.rel (0) target = $region45
  $region44: #{simple_afsc_forward.2} parent=0 // pred_region
    _
  $region45: #{simple_afsc_forward.2} parent=0 // pred_fallthru
    _
  // Predicated region
  $region46: #{simple_afsc_forward.2} parent=0 // pred_check
    _
  $region47: #{simple_afsc_forward.2} parent=0 // pred_check_branch
    %649 = sbr.rel (0) target = $region49
  $region48: #{simple_afsc_forward.2} parent=0 // pred_region
    _
  $region49: #{simple_afsc_forward.2} parent=0 // pred_fallthru
    _

// kernel: simple_afsc_forward.3
$region0: #{simple_afsc_forward.3}
  #allocation0 [shape = 'u32[]', space=smem, size = 0x4, offset = 0x4, fixed_abs, tag = 'smem constant byte address 0x4 - core index']
  #allocation1 [shape = 'u32[72,128]{1,0:T(1,128)}', space=vmem, size = 0x9000, scoped, tag = 'internal scratch']
  %s0 = inlined_call_operand.vmem [shape: f32[16,16], index: 0, kind: input, shape index: {}]
  %s1 = inlined_call_operand.vmem [shape: f32[16,32], index: 1, kind: input, shape index: {}]
  %s2 = inlined_call_operand.hbm [shape: f32[1,1], index: 2, kind: output, shape index: {}]
  %s3 = sld [smem:[#allocation0]]
  $region18: #{simple_afsc_forward.3} parent=0
    _
  %s5 = ssub.s32 1, %s3
  %s6 = scalar_select 0, %s5, %s3
  $region1: #{simple_afsc_forward.3} parent=0
    #allocation2 [shape = 'u8[512]{0}', space=vmem, size = 0x400, scoped, tag = 'output window, operand 0, single buffered']
    #allocation3 [shape = 's32[1]{0}', space=sflag, size = 0x4, scoped, tag = 'scoped memory for simple_afsc_forward.3']
    %7 = vsyncpa [#allocation3], 0
    // Predicated region
    $region2: #{simple_afsc_forward.3} parent=1 // pred_check
      _
    $region3: #{simple_afsc_forward.3} parent=1 // pred_check_branch
      %9 = sbr.rel (0) target = $region5
    $region4: #{simple_afsc_forward.3} parent=1 // pred_region
      _
    $region5: #{simple_afsc_forward.3} parent=1 // pred_fallthru
      _
    // Predicated region
    $region6: #{simple_afsc_forward.3} parent=1 // pred_check
      _
    $region7: #{simple_afsc_forward.3} parent=1 // pred_check_branch
      %11 = sbr.rel (0) target = $region9
    $region8: #{simple_afsc_forward.3} parent=1 // pred_region
      _
    $region9: #{simple_afsc_forward.3} parent=1 // pred_fallthru
      _
    %v12 = vld [vmem:[%s0] sm:$0xff]
    %v13 = vld [vmem:[%s0 + $0x8] sm:$0xff]
    %v14 = vld [vmem:[%s1] sm:$0xff]
    %v15 = vld [vmem:[%s1 + $0x8] sm:$0xff]
    %vm16 = vcmask 130048
    %v18 = vsel %vm16, %v12, 0
    %v21 = vsel %vm16, %v13, 0
    %23 = vmatpush.msra.mxu0 0.0
    %24 = vmatpush.msra.mxu0 0.0
    %25 = vmatpush.msra.mxu0 0.0
    %26 = vmatpush.msra.mxu0 0.0
    %27 = vmatpush.msra.mxu0 0.0
    %28 = vmatpush.msra.mxu0 0.0
    %29 = vmatpush.msra.mxu0 0.0
    %30 = vmatpush.msra.mxu0 0.0
    %31 = vmatpush.msra.mxu0 0.0
    %32 = vmatpush.msra.mxu0 0.0
    %33 = vmatpush.msra.mxu0 0.0
    %34 = vmatpush.msra.mxu0 0.0
    %35 = vmatpush.msra.mxu0 0.0
    %36 = vmatpush.msra.mxu0 0.0
    %37 = vmatpush.msra.mxu0 %v15
    %38 = vmatpush.msra.mxu0 %v14
    %39 = vmatmul.f32.gmra.mxu0 %v18
    %v40 = vpop.f32.mrf.mxu0
    %v41 = vadd.f32 0.0, %v40
    %42 = vmatmul.f32.gmra.mxu0 %v21
    %v43 = vpop.f32.mrf.mxu0
    %v44 = vadd.f32 0.0, %v43
    %45 = vdwg.mxu0
    %48 = vrot.lane.b32.xlu0 %v41, 16
    %v49 = vpop.permute.xlu0 %48
    %50 = vrot.lane.b32.xlu0 %v44, 16
    %v51 = vpop.permute.xlu0 %50
    %v54 = vmul.f32 %v14, %v49
    %v55 = vmul.f32 %v15, %v51
    %56 = vrot.lane.b32.xlu0 %v41, 112
    %v57 = vpop.permute.xlu0 %56
    %58 = vrot.lane.b32.xlu0 %v44, 112
    %v59 = vpop.permute.xlu0 %58
    %v62 = vmul.f32 %v14, %v57
    %v63 = vmul.f32 %v15, %v59
    %66 = vrot.lane.b32.xlu0 %v62, 16
    %v67 = vpop.permute.xlu0 %66
    %68 = vrot.lane.b32.xlu0 %v63, 16
    %v69 = vpop.permute.xlu0 %68
    %v72 = vadd.f32 %v54, %v67
    %v73 = vadd.f32 %v55, %v69
    %76 = vrot.lane.b32.xlu0 %v72, 112
    %v77 = vpop.permute.xlu0 %76
    %78 = vrot.lane.b32.xlu0 %v73, 112
    %v79 = vpop.permute.xlu0 %78
    %v82 = vsel %vm16, %v77, 0.0
    %83 = vadd.xlane.f32.xlu0 %v82
    %v84 = vpop.xlane.xlu0 %83
    %v85 = vsel %vm16, %v79, 0.0
    %86 = vadd.xlane.f32.xlu0 %v85
    %v87 = vpop.xlane.xlu0 %86
    %v88 = vadd.f32 %v84, %v87
    %v89 = vrot.slane %v88, 4
    %v90 = vadd.f32 %v88, %v89
    %v91 = vrot.slane %v90, 2
    %v92 = vadd.f32 %v90, %v91
    %v93 = vrot.slane %v92, 1
    %v94 = vadd.f32 %v92, %v93
    %vm95 = vcmask 0
    %96 = vst.msk [vmem:[#allocation2] sm:$0x1] %vm95, %v94
    // Predicated region
    $region10: #{simple_afsc_forward.3} parent=1 // pred_check
      _
    $region11: #{simple_afsc_forward.3} parent=1 // pred_check_branch
      %98 = sbr.rel (0) target = $region13
    $region12: #{simple_afsc_forward.3} parent=1 // pred_region
      %100 = vsyncadd [#allocation3], 0
      %s102 = sshll.u32 [#allocation2], 4
      %s103 = int_to_ptr.vmem [resolvable:$true] %s102
      %s104 = sshll.u32 %s2, 4
      %s105 = int_to_ptr.hbm [resolvable:$true] %s104
      %107 = dma.vmem_to_hbm [thread:$0]  %s103, 16, %s105, [#allocation3]
    $region13: #{simple_afsc_forward.3} parent=1 // pred_fallthru
      _
    // Predicated region
    $region14: #{simple_afsc_forward.3} parent=1 // pred_check
      _
    $region15: #{simple_afsc_forward.3} parent=1 // pred_check_branch
      %109 = sbr.rel (0) target = $region17
    $region16: #{simple_afsc_forward.3} parent=1 // pred_region
      %111 = dma.done [#allocation3], 16
    $region17: #{simple_afsc_forward.3} parent=1 // pred_fallthru
      _
    %112 = vsyncpa [#allocation3], 1

</llo_original>
